<compile_context>
chip_gen: v7x
topology: tpu7x:2x2x1
jax: 0.10.0
libtpu: 0.0.40
codegen_flags: <defaults>
</compile_context>

<pallas_src>
import math

import jax
import jax.numpy as jnp
import numpy as np
from jax.experimental import pallas as pl
from jax.experimental.pallas import tpu as pltpu


def _vpn_kernel(x_ref, w1_ref, b1_ref, w2_ref, wbig_ref, bbig_ref, o_ref):
    # x_ref    : (RT, N)      f32    RT = gb*C folded rows (gb whole batches)
    # w1_ref   : (N, M)       f32    Linear1 weight, stored (in, out)
    # b1_ref   : (1, M)       f32
    # w2_ref   : (M, M)       f32    Linear2 weight, stored (in, out)
    # wbig_ref : (gb*SC, RT)  bf16   kron(I_gb, Wc): block-diagonal 1x1-conv weight
    # bbig_ref : (gb*SC, M)   f32    tiled (sum_c Wc)*b2 + bc  (b2 folded in)
    # o_ref    : (gb*SC, M)
    x = x_ref[...].astype(jnp.bfloat16)
    w1 = w1_ref[...].astype(jnp.bfloat16)
    # fc_transform[0]: Linear(ih*iw -> sh*sw)   -- bf16 MXU feed, f32 accumulation
    h = jnp.dot(x, w1, preferred_element_type=jnp.float32) + b1_ref[...]
    # fc_transform[1]: SiLU -- elementwise math kept in f32 (EUP sigmoid slot)
    h = h * jax.nn.sigmoid(h)
    # fc_transform[2]: Linear(sh*sw -> sh*sw); its bias b2 is folded into bbig
    w2 = w2_ref[...].astype(jnp.bfloat16)
    g = jnp.dot(h.astype(jnp.bfloat16), w2, preferred_element_type=jnp.float32)
    # fc_transform[3]: Dropout(p=0.3) -> identity at inference
    # TODO(synk): train-mode dropout (p=0.3) not implemented; eval semantics only.
    # conv1: 1x1 Conv2d(ic -> sc) == per-batch channel mix; done as one block-diagonal
    # matmul so it keeps full MXU contraction depth (K = RT) instead of K = C.
    out = jnp.dot(wbig_ref[...], g.astype(jnp.bfloat16),
                  preferred_element_type=jnp.float32)
    o_ref[...] = (out + bbig_ref[...]).astype(o_ref.dtype)


def _batches_per_tile(B, C, sc, target_rows=256):
    """Whole batches per grid step.

    gb must keep both RT = gb*C and gb*sc multiples of 8 (sublane constraint on the
    x block and the output block when the grid has >1 step).
    """
    g0 = math.lcm(math.lcm(8, C) // C, math.lcm(8, sc) // sc)
    gb = max(g0, (target_rows // (C * g0)) * g0)      # cap rows/tile (MXU-friendly, bounds kron waste)
    gb = min(gb, -(-B // g0) * g0)                    # don't overshoot the (padded) batch
    half = ((B // 2) // g0) * g0                      # prefer >=2 grid steps (v7x: 2 TCs)
    if half >= g0:
        gb = min(gb, half)
    return gb


def vpn_transform(x, params, space_featmap_size, *, target_rows=256):
    """Forward pass of VPNTransform; returns (B, sc, sh, sw)."""
    B, C, H, W = x.shape
    sc, sh, sw = space_featmap_size
    N = H * W
    M = sh * sw
    w1, b1, w2, b2, wc, bc = params

    gb = _batches_per_tile(B, C, sc, target_rows)
    num_tiles = -(-B // gb)
    Bp = num_tiles * gb
    RT = gb * C                                       # rows per grid step (multiple of 8)

    # Fold batch*channel into the matmul row dimension (no-copy reshape); pad batch to a
    # tile multiple only when needed.  Kept f32 -> cast to bf16 inside the kernel.
    xf = x.reshape(B * C, N)
    if Bp != B:
        xf = jnp.pad(xf, ((0, (Bp - B) * C), (0, 0)))

    # Block-diagonal 1x1-conv weight and combined conv bias (b2 folded in):
    #   out[b,o,m] = sum_c wc[o,c]*(s@w2)[b,c,m] + (sum_c wc[o,c])*b2[m] + bc[o]
    wbig = jnp.kron(jnp.eye(gb, dtype=jnp.bfloat16), wc.astype(jnp.bfloat16))  # (gb*sc, RT)
    bias_conv = wc.sum(axis=1, keepdims=True) * b2 + bc                        # (sc, M)
    bbig = jnp.tile(bias_conv, (gb, 1)).astype(jnp.float32)                    # (gb*sc, M)

    x_spec_kwargs = {}
    if num_tiles >= 3:
        # Tiny per-step compute: deepen x pipelining so its DMA latency stays hidden.
        x_spec_kwargs["pipeline_mode"] = pl.Buffered(3)

    out_fold = pl.pallas_call(
        _vpn_kernel,
        out_shape=jax.ShapeDtypeStruct((Bp * sc, M), x.dtype),
        grid=(num_tiles,),
        in_specs=[
            pl.BlockSpec((RT, N), lambda t: (t, 0), **x_spec_kwargs),
            # Constant block indices -> weights are DMA'd once, stay VMEM-resident.
            pl.BlockSpec((N, M), lambda t: (0, 0)),
            pl.BlockSpec((1, M), lambda t: (0, 0)),
            pl.BlockSpec((M, M), lambda t: (0, 0)),
            pl.BlockSpec((gb * sc, RT), lambda t: (0, 0)),
            pl.BlockSpec((gb * sc, M), lambda t: (0, 0)),
        ],
        out_specs=pl.BlockSpec((gb * sc, M), lambda t: (t, 0)),
        compiler_params=pltpu.CompilerParams(dimension_semantics=("parallel",)),
    )(xf, w1, b1, w2, wbig, bbig)

    # TODO(synk): the source views the fc output (size sh*sw) to (sh*4, sw*4), which is
    # element-count-inconsistent (would raise in PyTorch); the 1x1 conv is spatial-shape
    # agnostic, so we return the consistent (B, sc, sh, sw) NCHW map instead.
    return out_fold.reshape(Bp, sc, M)[:B].reshape(B, sc, sh, sw)


def init_params(key, image_featmap_size, space_featmap_size, dtype=jnp.float32):
    """Deterministic init mirroring nn.Linear / nn.Conv2d default (U(-1/sqrt(fan_in), ...))."""
    ic, ih, iw = image_featmap_size
    sc, sh, sw = space_featmap_size
    N, M = ih * iw, sh * sw
    ks = jax.random.split(key, 6)
    k1 = 1.0 / np.sqrt(N)
    w1 = jax.random.uniform(ks[0], (N, M), dtype, -k1, k1)    # Linear1 weight, stored (in, out)
    b1 = jax.random.uniform(ks[1], (1, M), dtype, -k1, k1)
    k2 = 1.0 / np.sqrt(M)
    w2 = jax.random.uniform(ks[2], (M, M), dtype, -k2, k2)    # Linear2 weight, stored (in, out)
    b2 = jax.random.uniform(ks[3], (1, M), dtype, -k2, k2)
    kc = 1.0 / np.sqrt(ic)
    wc = jax.random.uniform(ks[4], (sc, ic), dtype, -kc, kc)  # 1x1 conv kernel squeezed to (SC, C)
    bc = jax.random.uniform(ks[5], (sc, 1), dtype, -kc, kc)
    return (w1, b1, w2, b2, wc, bc)


def vpn_reference(x, params, space_featmap_size):
    """Pure-JAX f32 reference of the same forward pass."""
    B, C, H, W = x.shape
    sc, sh, sw = space_featmap_size
    w1, b1, w2, b2, wc, bc = params
    xf = x.reshape(B, C, H * W)
    h = jnp.einsum("bcn,nm->bcm", xf, w1, precision="highest") + b1.reshape(1, 1, -1)
    h = h * jax.nn.sigmoid(h)
    h = jnp.einsum("bcm,mk->bck", h, w2, precision="highest") + b2.reshape(1, 1, -1)
    out = jnp.einsum("oc,bcm->bom", wc, h, precision="highest") + bc.reshape(1, -1, 1)
    return out.reshape(B, sc, sh, sw)


if __name__ == "__main__":
    image_featmap_size = (4, 16, 16)   # (ic, ih, iw)
    space_featmap_size = (8, 8, 16)    # (sc, sh, sw)
    B = 2

    key = jax.random.PRNGKey(0)
    kx, kp = jax.random.split(key)
    ic, ih, iw = image_featmap_size
    x = jax.random.normal(kx, (B, ic, ih, iw), jnp.float32)
    params = init_params(kp, image_featmap_size, space_featmap_size)

    out = vpn_transform(x, params, space_featmap_size)
    out = jax.block_until_ready(out)

    ref = vpn_reference(x, params, space_featmap_size)
    assert out.shape == (B, space_featmap_size[0], space_featmap_size[1], space_featmap_size[2])
    # Kernel feeds the MXU in bf16 (f32 accumulation), so allow bf16-level deviation
    # against the f32-highest reference.
    np.testing.assert_allclose(np.asarray(out), np.asarray(ref), rtol=1e-2, atol=2e-2)
    print("KERNEL_OK")
</pallas_src>

<mosaic_0001>
module attributes {stable_mosaic.version = 11 : i64} {
  func.func @_vpn_kernel(%arg0: i32, %arg1: memref<8x256xf32, #tpu.memory_space<vmem>>, %arg2: memref<256x128xf32, #tpu.memory_space<vmem>>, %arg3: memref<1x128xf32, #tpu.memory_space<vmem>>, %arg4: memref<128x128xf32, #tpu.memory_space<vmem>>, %arg5: memref<16x8xbf16, #tpu.memory_space<vmem>>, %arg6: memref<16x128xf32, #tpu.memory_space<vmem>>, %arg7: memref<16x128xf32, #tpu.memory_space<vmem>>) attributes {dimension_semantics = [#tpu.dimension_semantics<parallel>], iteration_bounds = array<i64: 1>, scalar_prefetch = 0 : i64, scratch_operands = 0 : i64, tpu.core_type = #tpu.core_type<tc>, window_params = [{transform_indices = @transform_0, window_bounds = array<i64: 8, 256>}, {pipeline_mode = #tpu.pipeline_mode<synchronous>, transform_indices = @transform_1, window_bounds = array<i64: 256, 128>}, {pipeline_mode = #tpu.pipeline_mode<synchronous>, transform_indices = @transform_2, window_bounds = array<i64: 1, 128>}, {pipeline_mode = #tpu.pipeline_mode<synchronous>, transform_indices = @transform_3, window_bounds = array<i64: 128, 128>}, {pipeline_mode = #tpu.pipeline_mode<synchronous>, transform_indices = @transform_4, window_bounds = array<i64: 16, 8>}, {pipeline_mode = #tpu.pipeline_mode<synchronous>, transform_indices = @transform_5, window_bounds = array<i64: 16, 128>}, {transform_indices = @transform_6, window_bounds = array<i64: 16, 128>}]} {
    %c0 = arith.constant 0 : index
    %c0_0 = arith.constant 0 : index
    %0 = vector.load %arg1[%c0, %c0_0] : memref<8x256xf32, #tpu.memory_space<vmem>>, vector<8x256xf32>
    %1 = arith.truncf %0 : vector<8x256xf32> to vector<8x256xbf16>
    %c0_1 = arith.constant 0 : index
    %c0_2 = arith.constant 0 : index
    %2 = vector.load %arg2[%c0_1, %c0_2] : memref<256x128xf32, #tpu.memory_space<vmem>>, vector<256x128xf32>
    %3 = arith.truncf %2 : vector<256x128xf32> to vector<256x128xbf16>
    %cst = arith.constant dense<0.000000e+00> : vector<8x128xf32>
    %4 = tpu.matmul %1, %3, %cst {dimension_numbers = #tpu.dot_dimension_numbers<[1], [0], [0], [1], [0, 0, 1, 1], [], []>} : vector<8x256xbf16>, vector<256x128xbf16>, vector<8x128xf32> -> vector<8x128xf32>
    %c0_3 = arith.constant 0 : index
    %c0_4 = arith.constant 0 : index
    %5 = vector.load %arg3[%c0_3, %c0_4] : memref<1x128xf32, #tpu.memory_space<vmem>>, vector<1x128xf32>
    %6 = vector.broadcast %5 : vector<1x128xf32> to vector<8x128xf32>
    %7 = arith.addf %4, %6 : vector<8x128xf32>
    %8 = arith.negf %7 : vector<8x128xf32>
    %9 = math.exp %8 : vector<8x128xf32>
    %cst_5 = arith.constant 1.000000e+00 : f32
    %10 = vector.broadcast %cst_5 : f32 to vector<8x128xf32>
    %11 = arith.addf %10, %9 : vector<8x128xf32>
    %12 = arith.divf %10, %11 : vector<8x128xf32>
    %13 = arith.mulf %7, %12 : vector<8x128xf32>
    %c0_6 = arith.constant 0 : index
    %c0_7 = arith.constant 0 : index
    %14 = vector.load %arg4[%c0_6, %c0_7] : memref<128x128xf32, #tpu.memory_space<vmem>>, vector<128x128xf32>
    %15 = arith.truncf %14 : vector<128x128xf32> to vector<128x128xbf16>
    %16 = arith.truncf %13 : vector<8x128xf32> to vector<8x128xbf16>
    %cst_8 = arith.constant dense<0.000000e+00> : vector<8x128xf32>
    %17 = tpu.matmul %16, %15, %cst_8 {dimension_numbers = #tpu.dot_dimension_numbers<[1], [0], [0], [1], [0, 0, 1, 1], [], []>} : vector<8x128xbf16>, vector<128x128xbf16>, vector<8x128xf32> -> vector<8x128xf32>
    %c0_9 = arith.constant 0 : index
    %c0_10 = arith.constant 0 : index
    %18 = vector.load %arg5[%c0_9, %c0_10] : memref<16x8xbf16, #tpu.memory_space<vmem>>, vector<16x8xbf16>
    %19 = arith.truncf %17 : vector<8x128xf32> to vector<8x128xbf16>
    %cst_11 = arith.constant dense<0.000000e+00> : vector<16x128xf32>
    %20 = tpu.matmul %18, %19, %cst_11 {dimension_numbers = #tpu.dot_dimension_numbers<[1], [0], [0], [1], [0, 0, 1, 1], [], []>} : vector<16x8xbf16>, vector<8x128xbf16>, vector<16x128xf32> -> vector<16x128xf32>
    %c0_12 = arith.constant 0 : index
    %c0_13 = arith.constant 0 : index
    %21 = vector.load %arg6[%c0_12, %c0_13] : memref<16x128xf32, #tpu.memory_space<vmem>>, vector<16x128xf32>
    %22 = arith.addf %20, %21 : vector<16x128xf32>
    %c0_14 = arith.constant 0 : index
    %c0_15 = arith.constant 0 : index
    %23 = vector.load %arg7[%c0_14, %c0_15] : memref<16x128xf32, #tpu.memory_space<vmem>>, vector<16x128xf32>
    tpu.vector_store %arg7[%c0_14, %c0_15], %22 {strides = array<i32>} : memref<16x128xf32, #tpu.memory_space<vmem>>, vector<16x128xf32>,
    return
  }
  func.func @transform_0(%arg0: i32) -> (i32, i32) {
    %c0_i32 = arith.constant 0 : i32
    %c0_i32_0 = arith.constant 0 : i32
    return %arg0, %c0_i32 : i32, i32
  }
  func.func @transform_1(%arg0: i32) -> (i32, i32) {
    %c0_i32 = arith.constant 0 : i32
    %c0_i32_0 = arith.constant 0 : i32
    %c0_i32_1 = arith.constant 0 : i32
    return %c0_i32, %c0_i32_0 : i32, i32
  }
  func.func @transform_2(%arg0: i32) -> (i32, i32) {
    %c0_i32 = arith.constant 0 : i32
    %c0_i32_0 = arith.constant 0 : i32
    %c0_i32_1 = arith.constant 0 : i32
    return %c0_i32, %c0_i32_0 : i32, i32
  }
  func.func @transform_3(%arg0: i32) -> (i32, i32) {
    %c0_i32 = arith.constant 0 : i32
    %c0_i32_0 = arith.constant 0 : i32
    %c0_i32_1 = arith.constant 0 : i32
    return %c0_i32, %c0_i32_0 : i32, i32
  }
  func.func @transform_4(%arg0: i32) -> (i32, i32) {
    %c0_i32 = arith.constant 0 : i32
    %c0_i32_0 = arith.constant 0 : i32
    %c0_i32_1 = arith.constant 0 : i32
    return %c0_i32, %c0_i32_0 : i32, i32
  }
  func.func @transform_5(%arg0: i32) -> (i32, i32) {
    %c0_i32 = arith.constant 0 : i32
    %c0_i32_0 = arith.constant 0 : i32
    %c0_i32_1 = arith.constant 0 : i32
    return %c0_i32, %c0_i32_0 : i32, i32
  }
  func.func @transform_6(%arg0: i32) -> (i32, i32) {
    %c0_i32 = arith.constant 0 : i32
    %c0_i32_0 = arith.constant 0 : i32
    return %arg0, %c0_i32 : i32, i32
  }
}

</mosaic_0001>

<llo_original>
// kernel: tpu_custom_call.1
$region0: #{tpu_custom_call.1}
  #allocation0 [shape = 'u32[]', space=smem, size = 0x4, offset = 0x4, fixed_abs, tag = 'smem constant byte address 0x4 - core index']
  #allocation1 [shape = 'u32[144,128]{1,0:T(1,128)}', space=vmem, size = 0x12000, scoped, tag = 'internal scratch']
  %s0 = inlined_call_operand.hbm [shape: f32[8,256], index: 0, kind: input, shape index: {}]
  %s1 = inlined_call_operand.hbm [shape: f32[256,128], index: 1, kind: input, shape index: {}]
  %s2 = inlined_call_operand.vmem [shape: f32[1,128], index: 2, kind: input, shape index: {}]
  %s3 = inlined_call_operand.hbm [shape: f32[128,128], index: 3, kind: input, shape index: {}]
  %s4 = inlined_call_operand.vmem [shape: bf16[16,8], index: 4, kind: input, shape index: {}]
  %s5 = inlined_call_operand.vmem [shape: f32[16,128], index: 5, kind: input, shape index: {}]
  %s6 = inlined_call_operand.hbm [shape: f32[16,128], index: 6, kind: output, shape index: {}]
  %s7 = sld [smem:[#allocation0]]
  $region46: #{tpu_custom_call.1} parent=0
    _
  %s9 = ssub.s32 1, %s7
  %s10 = scalar_select 0, %s9, %s7
  $region1: #{tpu_custom_call.1} parent=0
    #allocation2 [shape = 'u8[8192]{0}', space=vmem, size = 0x2000, scoped, tag = 'input window, operand 0, single buffered']
    #allocation3 [shape = 's32[1]{0}', space=sflag, size = 0x4, scoped, tag = 'scoped memory for tpu_custom_call.1']
    #allocation4 [shape = 's32[1]{0}', space=sflag, size = 0x4, scoped, tag = 'scoped memory for tpu_custom_call.1']
    #allocation5 [shape = 'u8[131072]{0}', space=vmem, size = 0x20000, scoped, tag = 'input window, operand 1, single buffered']
    #allocation6 [shape = 's32[1]{0}', space=sflag, size = 0x4, scoped, tag = 'scoped memory for tpu_custom_call.1']
    #allocation7 [shape = 'u8[65536]{0}', space=vmem, size = 0x10000, scoped, tag = 'input window, operand 3, single buffered']
    #allocation8 [shape = 'u8[8192]{0}', space=vmem, size = 0x2000, scoped, tag = 'output window, operand 0, single buffered']
    %11 = vsyncpa [#allocation3], 0
    %12 = vsyncpa [#allocation6], 0
    %13 = vsyncpa [#allocation4], 0
    // Predicated region
    $region2: #{tpu_custom_call.1} parent=1 // pred_check
      _
    $region3: #{tpu_custom_call.1} parent=1 // pred_check_branch
      %15 = sbr.rel (0) target = $region5
    $region4: #{tpu_custom_call.1} parent=1 // pred_region
      %s17 = ssub.s32 256, 256
      %18 = vsyncadd [#allocation3], %s17
      %s20 = sshll.u32 [#allocation2], 4
      %s21 = int_to_ptr.vmem [resolvable:$true] %s20
      %23 = dma.hbm_to_vmem [thread:$0]  %s0, 256, %s21, [#allocation3]
    $region5: #{tpu_custom_call.1} parent=1 // pred_fallthru
      _
    // Predicated region
    $region6: #{tpu_custom_call.1} parent=1 // pred_check
      _
    $region7: #{tpu_custom_call.1} parent=1 // pred_check_branch
      %25 = sbr.rel (0) target = $region9
    $region8: #{tpu_custom_call.1} parent=1 // pred_region
      %s27 = ssub.s32 4096, 4096
      %28 = vsyncadd [#allocation6], %s27
      %s29 = sshll.u32 [#allocation5], 4
      %s30 = int_to_ptr.vmem [resolvable:$true] %s29
      %35 = dma.hbm_to_vmem [thread:$0]  %s1, 4096, %s30, [#allocation6], 128, 128, 8
    $region9: #{tpu_custom_call.1} parent=1 // pred_fallthru
      _
    // Predicated region
    $region10: #{tpu_custom_call.1} parent=1 // pred_check
      _
    $region11: #{tpu_custom_call.1} parent=1 // pred_check_branch
      %37 = sbr.rel (0) target = $region13
    $region12: #{tpu_custom_call.1} parent=1 // pred_region
      _
    $region13: #{tpu_custom_call.1} parent=1 // pred_fallthru
      _
    // Predicated region
    $region14: #{tpu_custom_call.1} parent=1 // pred_check
      _
    $region15: #{tpu_custom_call.1} parent=1 // pred_check_branch
      %39 = sbr.rel (0) target = $region17
    $region16: #{tpu_custom_call.1} parent=1 // pred_region
      %s41 = ssub.s32 2048, 2048
      %42 = vsyncadd [#allocation6], %s41
      %s43 = sshll.u32 [#allocation7], 4
      %s44 = int_to_ptr.vmem [resolvable:$true] %s43
      %49 = dma.hbm_to_vmem [thread:$0]  %s3, 2048, %s44, [#allocation6], 128, 128, 8
    $region17: #{tpu_custom_call.1} parent=1 // pred_fallthru
      _
    // Predicated region
    $region18: #{tpu_custom_call.1} parent=1 // pred_check
      _
    $region19: #{tpu_custom_call.1} parent=1 // pred_check_branch
      %51 = sbr.rel (0) target = $region21
    $region20: #{tpu_custom_call.1} parent=1 // pred_region
      _
    $region21: #{tpu_custom_call.1} parent=1 // pred_fallthru
      _
    // Predicated region
    $region22: #{tpu_custom_call.1} parent=1 // pred_check
      _
    $region23: #{tpu_custom_call.1} parent=1 // pred_check_branch
      %53 = sbr.rel (0) target = $region25
    $region24: #{tpu_custom_call.1} parent=1 // pred_region
      _
    $region25: #{tpu_custom_call.1} parent=1 // pred_fallthru
      _
    // Predicated region
    $region26: #{tpu_custom_call.1} parent=1 // pred_check
      _
    $region27: #{tpu_custom_call.1} parent=1 // pred_check_branch
      %55 = sbr.rel (0) target = $region29
    $region28: #{tpu_custom_call.1} parent=1 // pred_region
      %56 = dma.done [#allocation3], 256
    $region29: #{tpu_custom_call.1} parent=1 // pred_fallthru
      _
    // Predicated region
    $region30: #{tpu_custom_call.1} parent=1 // pred_check
      _
    $region31: #{tpu_custom_call.1} parent=1 // pred_check_branch
      %58 = sbr.rel (0) target = $region33
    $region32: #{tpu_custom_call.1} parent=1 // pred_region
      %59 = dma.done [#allocation6], 4096
    $region33: #{tpu_custom_call.1} parent=1 // pred_fallthru
      _
    // Predicated region
    $region34: #{tpu_custom_call.1} parent=1 // pred_check
      _
    $region35: #{tpu_custom_call.1} parent=1 // pred_check_branch
      %61 = sbr.rel (0) target = $region37
    $region36: #{tpu_custom_call.1} parent=1 // pred_region
      %62 = dma.done [#allocation6], 2048
    $region37: #{tpu_custom_call.1} parent=1 // pred_fallthru
      _
    %v64 = vld [vmem:[#allocation2] sm:$0xff]
    %v65 = vld [vmem:[#allocation2 + $0x8] sm:$0xff]
    %v66 = vpack.c.bf16 %v64, %v64
    %v67 = vpack.c.bf16 %v65, %v65
    %v68 = vld [vmem:[#allocation5] sm:$0xff]
    %v69 = vld [vmem:[#allocation5 + $0x8] sm:$0xff]
    %v70 = vld [vmem:[#allocation5 + $0x10] sm:$0xff]
    %v71 = vld [vmem:[#allocation5 + $0x18] sm:$0xff]
    %v72 = vld [vmem:[#allocation5 + $0x20] sm:$0xff]
    %v73 = vld [vmem:[#allocation5 + $0x28] sm:$0xff]
    %v74 = vld [vmem:[#allocation5 + $0x30] sm:$0xff]
    %v75 = vld [vmem:[#allocation5 + $0x38] sm:$0xff]
    %v76 = vld [vmem:[#allocation5 + $0x40] sm:$0xff]
    %v77 = vld [vmem:[#allocation5 + $0x48] sm:$0xff]
    %v78 = vld [vmem:[#allocation5 + $0x50] sm:$0xff]
    %v79 = vld [vmem:[#allocation5 + $0x58] sm:$0xff]
    %v80 = vld [vmem:[#allocation5 + $0x60] sm:$0xff]
    %v81 = vld [vmem:[#allocation5 + $0x68] sm:$0xff]
    %v82 = vld [vmem:[#allocation5 + $0x70] sm:$0xff]
    %v83 = vld [vmem:[#allocation5 + $0x78] sm:$0xff]
    %v84 = vld [vmem:[#allocation5 + $0x80] sm:$0xff]
    %v85 = vld [vmem:[#allocation5 + $0x88] sm:$0xff]
    %v86 = vld [vmem:[#allocation5 + $0x90] sm:$0xff]
    %v87 = vld [vmem:[#allocation5 + $0x98] sm:$0xff]
    %v88 = vld [vmem:[#allocation5 + $0xa0] sm:$0xff]
    %v89 = vld [vmem:[#allocation5 + $0xa8] sm:$0xff]
    %v90 = vld [vmem:[#allocation5 + $0xb0] sm:$0xff]
    %v91 = vld [vmem:[#allocation5 + $0xb8] sm:$0xff]
    %v92 = vld [vmem:[#allocation5 + $0xc0] sm:$0xff]
    %v93 = vld [vmem:[#allocation5 + $0xc8] sm:$0xff]
    %v94 = vld [vmem:[#allocation5 + $0xd0] sm:$0xff]
    %v95 = vld [vmem:[#allocation5 + $0xd8] sm:$0xff]
    %v96 = vld [vmem:[#allocation5 + $0xe0] sm:$0xff]
    %v97 = vld [vmem:[#allocation5 + $0xe8] sm:$0xff]
    %v98 = vld [vmem:[#allocation5 + $0xf0] sm:$0xff]
    %v99 = vld [vmem:[#allocation5 + $0xf8] sm:$0xff]
    %v100 = vpack.c.bf16 %v69, %v68
    %v101 = vpack.c.bf16 %v71, %v70
    %v102 = vpack.c.bf16 %v73, %v72
    %v103 = vpack.c.bf16 %v75, %v74
    %v104 = vpack.c.bf16 %v77, %v76
    %v105 = vpack.c.bf16 %v79, %v78
    %v106 = vpack.c.bf16 %v81, %v80
    %v107 = vpack.c.bf16 %v83, %v82
    %v108 = vpack.c.bf16 %v85, %v84
    %v109 = vpack.c.bf16 %v87, %v86
    %v110 = vpack.c.bf16 %v89, %v88
    %v111 = vpack.c.bf16 %v91, %v90
    %v112 = vpack.c.bf16 %v93, %v92
    %v113 = vpack.c.bf16 %v95, %v94
    %v114 = vpack.c.bf16 %v97, %v96
    %v115 = vpack.c.bf16 %v99, %v98
    %v116 = vld [vmem:[%s2] sm:$0x1]
    %v118 = vlaneseq
    %v119 = vshrl.u32 %v118, 7
    %v120 = vsub.s32 0, %v119
    %v121 = vrot.slane %v116, %v120
    %123 = vmatprep.subr.bf16.mxu0 0
    %124 = vmatpush1.bf16.msra.mxu0 %v100
    %125 = vmatprep.subr.bf16.mxu0 0
    %126 = vmatpush1.bf16.msra.mxu0 %v101
    %127 = vmatprep.subr.bf16.mxu0 0
    %128 = vmatpush1.bf16.msra.mxu0 %v102
    %129 = vmatprep.subr.bf16.mxu0 0
    %130 = vmatpush1.bf16.msra.mxu0 %v103
    %131 = vmatprep.subr.bf16.mxu0 0
    %132 = vmatpush1.bf16.msra.mxu0 %v104
    %133 = vmatprep.subr.bf16.mxu0 0
    %134 = vmatpush1.bf16.msra.mxu0 %v105
    %135 = vmatprep.subr.bf16.mxu0 0
    %136 = vmatpush1.bf16.msra.mxu0 %v106
    %137 = vmatprep.subr.bf16.mxu0 0
    %138 = vmatpush1.bf16.msra.mxu0 %v107
    %139 = vmatprep.subr.bf16.mxu0 0
    %140 = vmatpush1.bf16.msra.mxu0 %v108
    %141 = vmatprep.subr.bf16.mxu0 0
    %142 = vmatpush1.bf16.msra.mxu0 %v109
    %143 = vmatprep.subr.bf16.mxu0 0
    %144 = vmatpush1.bf16.msra.mxu0 %v110
    %145 = vmatprep.subr.bf16.mxu0 0
    %146 = vmatpush1.bf16.msra.mxu0 %v111
    %147 = vmatprep.subr.bf16.mxu0 0
    %148 = vmatpush1.bf16.msra.mxu0 %v112
    %149 = vmatprep.subr.bf16.mxu0 0
    %150 = vmatpush1.bf16.msra.mxu0 %v113
    %151 = vmatprep.subr.bf16.mxu0 0
    %152 = vmatpush1.bf16.msra.mxu0 %v114
    %153 = vmatprep.subr.bf16.mxu0 0
    %154 = vmatpush1.bf16.msra.mxu0 %v115
    %155 = vmatprep.mubr.bf16.mxu0 %v67
    %156 = vmatmul.mubr.bf16.gmra.mrb[0].mxu0 %v66
    %v157 = vpop.f32.mrb[0].mxu0
    %v158 = vadd.f32 %v121, %v157
    %v159 = vpop.f32.mrb[0].mxu0
    %v160 = vpop.f32.mrb[0].mxu0
    %v161 = vpop.f32.mrb[0].mxu0
    %162 = vdwg.mxu0
    %v163 = vxor.u32 %v158, 2147483648
    %v164 = vmul.f32 %v163, 1.442695
    %v165 = vpow.pop %v164
    %v166 = vadd.f32 %v165, 1.0
    %v167 = vrcp.pop %v166
    %v168 = vmul.f32 1.0, %v167
    %v169 = vmul.f32 %v158, %v168
    %v170 = vld [vmem:[#allocation7] sm:$0xff]
    %v171 = vld [vmem:[#allocation7 + $0x8] sm:$0xff]
    %v172 = vld [vmem:[#allocation7 + $0x10] sm:$0xff]
    %v173 = vld [vmem:[#allocation7 + $0x18] sm:$0xff]
    %v174 = vld [vmem:[#allocation7 + $0x20] sm:$0xff]
    %v175 = vld [vmem:[#allocation7 + $0x28] sm:$0xff]
    %v176 = vld [vmem:[#allocation7 + $0x30] sm:$0xff]
    %v177 = vld [vmem:[#allocation7 + $0x38] sm:$0xff]
    %v178 = vld [vmem:[#allocation7 + $0x40] sm:$0xff]
    %v179 = vld [vmem:[#allocation7 + $0x48] sm:$0xff]
    %v180 = vld [vmem:[#allocation7 + $0x50] sm:$0xff]
    %v181 = vld [vmem:[#allocation7 + $0x58] sm:$0xff]
    %v182 = vld [vmem:[#allocation7 + $0x60] sm:$0xff]
    %v183 = vld [vmem:[#allocation7 + $0x68] sm:$0xff]
    %v184 = vld [vmem:[#allocation7 + $0x70] sm:$0xff]
    %v185 = vld [vmem:[#allocation7 + $0x78] sm:$0xff]
    %v186 = vpack.c.bf16 %v171, %v170
    %v187 = vpack.c.bf16 %v173, %v172
    %v188 = vpack.c.bf16 %v175, %v174
    %v189 = vpack.c.bf16 %v177, %v176
    %v190 = vpack.c.bf16 %v179, %v178
    %v191 = vpack.c.bf16 %v181, %v180
    %v192 = vpack.c.bf16 %v183, %v182
    %v193 = vpack.c.bf16 %v185, %v184
    %v194 = vpack.c.bf16 %v169, %v169
    %195 = vmatprep.subr.bf16.mxu0 0
    %196 = vmatpush1.bf16.msra.mxu0 %v186
    %197 = vmatprep.subr.bf16.mxu0 0
    %198 = vmatpush1.bf16.msra.mxu0 %v187
    %199 = vmatprep.subr.bf16.mxu0 0
    %200 = vmatpush1.bf16.msra.mxu0 %v188
    %201 = vmatprep.subr.bf16.mxu0 0
    %202 = vmatpush1.bf16.msra.mxu0 %v189
    %203 = vmatprep.subr.bf16.mxu0 0
    %204 = vmatpush1.bf16.msra.mxu0 %v190
    %205 = vmatprep.subr.bf16.mxu0 0
    %206 = vmatpush1.bf16.msra.mxu0 %v191
    %207 = vmatprep.subr.bf16.mxu0 0
    %208 = vmatpush1.bf16.msra.mxu0 %v192
    %209 = vmatprep.subr.bf16.mxu0 0
    %210 = vmatpush1.bf16.msra.mxu0 %v193
    %211 = vmatprep.subr.bf16.mxu0 0
    %212 = vmatpush1.bf16.msra.mxu0 0
    %213 = vmatprep.subr.bf16.mxu0 0
    %214 = vmatpush1.bf16.msra.mxu0 0
    %215 = vmatprep.subr.bf16.mxu0 0
    %216 = vmatpush1.bf16.msra.mxu0 0
    %217 = vmatprep.subr.bf16.mxu0 0
    %218 = vmatpush1.bf16.msra.mxu0 0
    %219 = vmatprep.subr.bf16.mxu0 0
    %220 = vmatpush1.bf16.msra.mxu0 0
    %221 = vmatprep.subr.bf16.mxu0 0
    %222 = vmatpush1.bf16.msra.mxu0 0
    %223 = vmatprep.subr.bf16.mxu0 0
    %224 = vmatpush1.bf16.msra.mxu0 0
    %225 = vmatprep.subr.bf16.mxu0 0
    %226 = vmatpush1.bf16.msra.mxu0 0
    %227 = vmatprep.mubr.bf16.mxu0 0
    %228 = vmatmul.mubr.bf16.gmra.mrb[0].mxu0 %v194
    %v229 = vpop.f32.mrb[0].mxu0
    %v230 = vadd.f32 0.0, %v229
    %v231 = vpop.f32.mrb[0].mxu0
    %v232 = vpop.f32.mrb[0].mxu0
    %v233 = vpop.f32.mrb[0].mxu0
    %234 = vdwg.mxu0
    %v235 = vld [vmem:[%s4] sm:$0xf]
    %v236 = vld [vmem:[%s4 + $0x4] sm:$0xf]
    %v237 = vpack.c.bf16 %v230, %v230
    %v238 = vld [vmem:[%s5] sm:$0xff]
    %v239 = vld [vmem:[%s5 + $0x8] sm:$0xff]
    %v242 = vunpack.c.l.b16 %v235
    %v243 = vunpack.c.l.b16 %v236
    %v244 = vpack.c.b16 %v243, %v242
    %vm245 = vcmask 64512
    %v247 = vsel %vm245, %v244, 0
    %vm249 = vcmask 1043456
    %v251 = vsel %vm249, %v237, 0
    %253 = vmatprep.subr.bf16.mxu0 0
    %254 = vmatpush1.bf16.msra.mxu0 %v251
    %255 = vmatprep.subr.bf16.mxu0 0
    %256 = vmatpush1.bf16.msra.mxu0 0
    %257 = vmatprep.subr.bf16.mxu0 0
    %258 = vmatpush1.bf16.msra.mxu0 0
    %259 = vmatprep.subr.bf16.mxu0 0
    %260 = vmatpush1.bf16.msra.mxu0 0
    %261 = vmatprep.subr.bf16.mxu0 0
    %262 = vmatpush1.bf16.msra.mxu0 0
    %263 = vmatprep.subr.bf16.mxu0 0
    %264 = vmatpush1.bf16.msra.mxu0 0
    %265 = vmatprep.subr.bf16.mxu0 0
    %266 = vmatpush1.bf16.msra.mxu0 0
    %267 = vmatprep.subr.bf16.mxu0 0
    %268 = vmatpush1.bf16.msra.mxu0 0
    %269 = vmatprep.subr.bf16.mxu0 0
    %270 = vmatpush1.bf16.msra.mxu0 0
    %271 = vmatprep.subr.bf16.mxu0 0
    %272 = vmatpush1.bf16.msra.mxu0 0
    %273 = vmatprep.subr.bf16.mxu0 0
    %274 = vmatpush1.bf16.msra.mxu0 0
    %275 = vmatprep.subr.bf16.mxu0 0
    %276 = vmatpush1.bf16.msra.mxu0 0
    %277 = vmatprep.subr.bf16.mxu0 0
    %278 = vmatpush1.bf16.msra.mxu0 0
    %279 = vmatprep.subr.bf16.mxu0 0
    %280 = vmatpush1.bf16.msra.mxu0 0
    %281 = vmatprep.subr.bf16.mxu0 0
    %282 = vmatpush1.bf16.msra.mxu0 0
    %283 = vmatprep.subr.bf16.mxu0 0
    %284 = vmatpush1.bf16.msra.mxu0 0
    %285 = vmatprep.mubr.bf16.mxu0 0
    %286 = vmatmul.mubr.bf16.gmra.mrb[0].mxu0 %v247
    %v287 = vpop.f32.mrb[0].mxu0
    %v288 = vadd.f32 %v238, %v287
    %v289 = vpop.f32.mrb[0].mxu0
    %v290 = vpop.f32.mrb[0].mxu0
    %v291 = vadd.f32 %v239, %v290
    %v292 = vpop.f32.mrb[0].mxu0
    %293 = vdwg.mxu0
    %294 = vst [vmem:[#allocation8] sm:$0xff] %v288
    %295 = vst [vmem:[#allocation8 + $0x8] sm:$0xff] %v291
    // Predicated region
    $region38: #{tpu_custom_call.1} parent=1 // pred_check
      _
    $region39: #{tpu_custom_call.1} parent=1 // pred_check_branch
      %297 = sbr.rel (0) target = $region41
    $region40: #{tpu_custom_call.1} parent=1 // pred_region
      %s299 = ssub.s32 256, 256
      %300 = vsyncadd [#allocation4], %s299
      %s301 = sshll.u32 [#allocation8], 4
      %s302 = int_to_ptr.vmem [resolvable:$true] %s301
      %307 = dma.vmem_to_hbm [thread:$0]  %s302, 256, %s6, [#allocation4], 128, 128, 8
    $region41: #{tpu_custom_call.1} parent=1 // pred_fallthru
      _
    // Predicated region
    $region42: #{tpu_custom_call.1} parent=1 // pred_check
      _
    $region43: #{tpu_custom_call.1} parent=1 // pred_check_branch
      %309 = sbr.rel (0) target = $region45
    $region44: #{tpu_custom_call.1} parent=1 // pred_region
      %310 = dma.done [#allocation4], 256
    $region45: #{tpu_custom_call.1} parent=1 // pred_fallthru
      _
    %311 = vsyncpa [#allocation3], 1
    %312 = vsyncpa [#allocation6], 1
    %313 = vsyncpa [#allocation4], 1

</llo_original>
